<compile_context>
chip_gen: v7x
topology: tpu7x:2x2x1
jax: 0.10.0
libtpu: 0.0.40
codegen_flags: <defaults>
</compile_context>

<pallas_src>
import jax
import jax.numpy as jnp
from jax.experimental import pallas as pl
from jax.experimental.pallas import tpu as pltpu

VOCAB_PAD_INDEX = 0     # self._vocab_pad_index


def _round_up(x, m):
    return (x + m - 1) // m * m


def pointer_generator_kernel(x_ref, attn_ref, amap_ref, wv_ref, bv_ref,
                             wsw_ref, bsw_ref,
                             vocab_out_ref, copy_out_ref,
                             m_sc, l_sc, pgen_sc):
    p = pl.program_id(1)          # 0: stats pass, 1: normalize/write pass
    v = pl.program_id(2)          # vocab tile index
    nv = pl.num_programs(2)

    Bb, T, D = x_ref.shape
    TV = wv_ref.shape[1]
    R = Bb * T

    # Fold (Bb, T) into the MXU row dimension (last dim unchanged -> cheap).
    x = x_ref[...].reshape(R, D)                                   # bf16 (R, D)

    @pl.when((p == 0) & (v == 0))
    def _init():
        m_sc[...] = jnp.full_like(m_sc, -jnp.inf)
        l_sc[...] = jnp.zeros_like(l_sc)
        # 2-way switch softmax == sigmoid of the logit difference (VPU + EUP, no MXU).
        logit = jnp.sum(x.astype(jnp.float32) * wsw_ref[...], axis=-1,
                        keepdims=True) + bsw_ref[0]
        pgen_sc[...] = jax.nn.sigmoid(logit)                       # (R, 1)

    # Vocab scores for this V tile: bf16 operands on the MXU, f32 accumulation,
    # f32 bias added after (pad-index column and padded vocab columns are -inf).
    s = jnp.dot(x, wv_ref[...], preferred_element_type=jnp.float32) + bv_ref[...]

    @pl.when(p == 0)
    def _stats():                                                  # online softmax stats
        m_old = m_sc[...]
        m_new = jnp.maximum(m_old, jnp.max(s, axis=-1, keepdims=True))
        l_sc[...] = (l_sc[...] * jnp.exp(m_old - m_new)
                     + jnp.sum(jnp.exp(s - m_new), axis=-1, keepdims=True))
        m_sc[...] = m_new

    @pl.when(p == 1)
    def _write():
        # Exact reciprocal keeps numerics tight; switch fused into the scale.
        scale = pgen_sc[...] * pl.reciprocal(l_sc[...], approx=False)   # (R, 1)
        vocab_out_ref[...] = (jnp.exp(s - m_sc[...]) * scale).reshape(Bb, T, TV)

        @pl.when(v == nv - 1)
        def _copy():
            # Tiny batched (T,S)@(S,Vd) matmuls, computed once per batch block.
            copy = jnp.einsum("bts,bsv->btv", attn_ref[...], amap_ref[...],
                              preferred_element_type=jnp.float32)
            copy_out_ref[...] = copy * (1.0 - pgen_sc[...]).reshape(Bb, T, 1)


def _pick_batch_block(B, T, target_rows=256):
    """Rows (Bb*T) feeding the MXU M dim (use target_rows=128 on v5e).
    Capped so the batch grid axis has >= 2 steps (v7x has 2 TensorCores)."""
    bb = max(1, min(B, target_rows // max(T, 1)))
    if B >= 2:
        bb = max(1, min(bb, B // 2))
    return bb


def pointer_generator(inputs, attn_w, attn_map, wv, bv, ws, bs,
                      vocab_pad_index=VOCAB_PAD_INDEX,
                      vocab_tile=2048, target_rows=256):
    """inputs (B,T,D), attn_w (B,T,S), attn_map (B,S,Vd),
       wv (D,V), bv (V,), ws (D,2), bs (2,)  ->  (B, T, V+Vd) f32"""
    B, T, D = inputs.shape
    V = wv.shape[1]
    S = attn_w.shape[2]
    Vd = attn_map.shape[2]

    f32, bf16 = jnp.float32, jnp.bfloat16

    # ---- wrapper-side glue (one-time, outside the hot loop) ----
    # Batch blocking: cdiv + zero padding (no exact-divisor requirement).
    Bb = _pick_batch_block(B, T, target_rows)
    n_b = (B + Bb - 1) // Bb
    B_pad = n_b * Bb

    # Vocab tiling: 128-aligned tile; pad V to a tile multiple with -inf bias cols.
    TV = min(vocab_tile, _round_up(V, 128))
    V_pad = _round_up(V, TV)
    NV = V_pad // TV

    # Dynamic vocab padded so the copy-part store stays lane-dense / unmasked.
    Vd_pad = _round_up(Vd, 128)

    # Pad mask + vocab padding folded into the f32 bias (-inf column -> exp == 0).
    bv_p = jnp.full((1, V_pad), -jnp.inf, f32).at[0, :V].set(bv.astype(f32))
    bv_p = bv_p.at[0, vocab_pad_index].set(-jnp.inf)
    wv_p = jnp.zeros((D, V_pad), bf16).at[:, :V].set(wv.astype(bf16))

    # 2-way switch softmax reduced to a sigmoid of the column difference.
    w_sw = (ws[:, 0] - ws[:, 1]).reshape(1, D).astype(f32)
    b_sw = (bs[0] - bs[1]).reshape(1).astype(f32)

    # bf16 MXU operands (f32 accumulation in-kernel); batch zero-padding.
    x_p = jnp.zeros((B_pad, T, D), bf16).at[:B].set(inputs.astype(bf16))
    attn_p = jnp.zeros((B_pad, T, S), bf16).at[:B].set(attn_w.astype(bf16))
    amap_p = jnp.zeros((B_pad, S, Vd_pad), bf16).at[:B, :, :Vd].set(attn_map.astype(bf16))

    rows = B_pad * T
    cost = pl.CostEstimate(
        flops=2 * 2 * rows * D * V_pad + 2 * rows * S * Vd_pad + 2 * rows * D,
        transcendentals=rows * (2 * V_pad + 1),
        bytes_accessed=(x_p.size * 2 + attn_p.size * 2 + amap_p.size * 2
                        + 2 * n_b * (wv_p.size * 2 + 4 * V_pad)
                        + 4 * rows * (V_pad + Vd_pad)),
    )

    try:    # raise the scoped-VMEM budget (defaults: 16/32/32 MiB on v5e/v6e/v7x)
        vmem_limit = int(pltpu.get_tpu_info().vmem_capacity_bytes * 3 // 4)
    except Exception:
        vmem_limit = 64 * 1024 * 1024

    grid_spec = pltpu.PrefetchScalarGridSpec(
        num_scalar_prefetch=0,
        grid=(n_b, 2, NV),      # batch blocks x {stats, write} pass x vocab tiles
        in_specs=[
            pl.BlockSpec((Bb, T, D), lambda b, p, v: (b, 0, 0)),
            pl.BlockSpec((Bb, T, S), lambda b, p, v: (b, 0, 0)),
            pl.BlockSpec((Bb, S, Vd_pad), lambda b, p, v: (b, 0, 0)),
            pl.BlockSpec((D, TV), lambda b, p, v: (0, v)),        # streamed weight tile
            pl.BlockSpec((1, TV), lambda b, p, v: (0, v)),        # f32 bias tile (-inf pads)
            pl.BlockSpec((1, D), lambda b, p, v: (0, 0),
                         pipeline_mode=pl.Buffered(1)),           # constant -> single buffer
            pl.BlockSpec(memory_space=pltpu.MemorySpace.SMEM),    # scalar switch bias
        ],
        out_specs=[
            pl.BlockSpec((Bb, T, TV), lambda b, p, v: (b, 0, v)),     # vocab part
            pl.BlockSpec((Bb, T, Vd_pad), lambda b, p, v: (b, 0, 0)), # copy part
        ],
        scratch_shapes=[
            pltpu.VMEM((Bb * T, 1), f32),   # running max
            pltpu.VMEM((Bb * T, 1), f32),   # running sum(exp)
            pltpu.VMEM((Bb * T, 1), f32),   # p_gen
        ],
    )

    vocab_out, copy_out = pl.pallas_call(
        pointer_generator_kernel,
        out_shape=[jax.ShapeDtypeStruct((B_pad, T, V_pad), f32),
                   jax.ShapeDtypeStruct((B_pad, T, Vd_pad), f32)],
        grid_spec=grid_spec,
        compiler_params=pltpu.CompilerParams(
            dimension_semantics=("parallel", "arbitrary", "arbitrary"),
            vmem_limit_bytes=vmem_limit),
        cost_estimate=cost,
    )(x_p, attn_p, amap_p, wv_p, bv_p, w_sw, b_sw)

    # Strip batch / vocab / dynamic-vocab padding and concatenate (dim=2).
    return jnp.concatenate([vocab_out[:B, :, :V], copy_out[:B, :, :Vd]], axis=2)


def pointer_generator_ref(inputs, attn_w, attn_map, wv, bv, ws, bs):
    """Pure-JAX f32 reference mirroring the PyTorch forward."""
    p = jax.nn.softmax(inputs @ ws + bs, axis=2)
    gen_switch = p[:, :, 0:1]
    copy_switch = p[:, :, 1:2]
    scores = inputs @ wv + bv
    scores = scores.at[:, :, VOCAB_PAD_INDEX].set(-jnp.inf)
    vocab_prob = jax.nn.softmax(scores, axis=2)
    copy_dist = jnp.einsum("bts,bsv->btv", attn_w, attn_map)
    return jnp.concatenate([vocab_prob * gen_switch, copy_dist * copy_switch], axis=2)


if __name__ == "__main__":
    B, T, D = 2, 8, 32          # batch, target_length, input_vector_dim
    V = 128                     # vocab_size
    S = 16                      # source_length
    Vd = 128                    # source_dynamic_vocab_size

    key = jax.random.PRNGKey(0)
    k1, k2, k3, k4, k5, k6, k7 = jax.random.split(key, 7)

    # Deterministic "Linear" parameter init (uniform(-1/sqrt(D), 1/sqrt(D))).
    bound = 1.0 / jnp.sqrt(jnp.float32(D))
    wv = jax.random.uniform(k1, (D, V), jnp.float32, -bound, bound)
    bv = jax.random.uniform(k2, (V,), jnp.float32, -bound, bound)
    ws = jax.random.uniform(k3, (D, 2), jnp.float32, -bound, bound)
    bs = jax.random.uniform(k4, (2,), jnp.float32, -bound, bound)

    inputs = jax.random.normal(k5, (B, T, D), jnp.float32)
    attn_w = jax.nn.softmax(jax.random.normal(k6, (B, T, S), jnp.float32), axis=-1)
    # sparse-ish indicator map: each source token points at one dynamic-vocab slot
    idx = jax.random.randint(k7, (B, S), 0, Vd)
    attn_map = jax.nn.one_hot(idx, Vd, dtype=jnp.float32)

    out = pointer_generator(inputs, attn_w, attn_map, wv, bv, ws, bs)
    out = jax.block_until_ready(out)

    ref = pointer_generator_ref(inputs, attn_w, attn_map, wv, bv, ws, bs)
    assert out.shape == (B, T, V + Vd)
    # Tolerance relaxed vs the f32 version: MXU operands are bf16 now.
    assert jnp.allclose(out, ref, atol=2e-3, rtol=2e-2)

    print("KERNEL_OK")
</pallas_src>

<mosaic_0001>
module attributes {stable_mosaic.version = 11 : i64} {
  func.func @pointer_generator_kernel(%arg0: i32, %arg1: i32, %arg2: i32, %arg3: memref<1x8x32xbf16, #tpu.memory_space<vmem>>, %arg4: memref<1x8x16xbf16, #tpu.memory_space<vmem>>, %arg5: memref<1x16x128xbf16, #tpu.memory_space<vmem>>, %arg6: memref<32x128xbf16, #tpu.memory_space<vmem>>, %arg7: memref<1x128xf32, #tpu.memory_space<vmem>>, %arg8: memref<1x32xf32, #tpu.memory_space<vmem>>, %arg9: memref<1xf32, #tpu.memory_space<smem>>, %arg10: memref<1x8x128xf32, #tpu.memory_space<vmem>>, %arg11: memref<1x8x128xf32, #tpu.memory_space<vmem>>, %arg12: memref<8x1xf32, #tpu.memory_space<vmem>>, %arg13: memref<8x1xf32, #tpu.memory_space<vmem>>, %arg14: memref<8x1xf32, #tpu.memory_space<vmem>>) attributes {dimension_semantics = [#tpu.dimension_semantics<parallel>, #tpu.dimension_semantics<arbitrary>, #tpu.dimension_semantics<arbitrary>], iteration_bounds = array<i64: 2, 2, 1>, scalar_prefetch = 0 : i64, scratch_operands = 3 : i64, tpu.core_type = #tpu.core_type<tc>, window_params = [{transform_indices = @transform_0, window_bounds = array<i64: 1, 8, 32>}, {transform_indices = @transform_1, window_bounds = array<i64: 1, 8, 16>}, {transform_indices = @transform_2, window_bounds = array<i64: 1, 16, 128>}, {transform_indices = @transform_3, window_bounds = array<i64: 32, 128>}, {transform_indices = @transform_4, window_bounds = array<i64: 1, 128>}, {pipeline_mode = #tpu.pipeline_mode<synchronous>, transform_indices = @transform_5, window_bounds = array<i64: 1, 32>}, {transform_indices = @transform_6, window_bounds = array<i64: 1>}, {transform_indices = @transform_7, window_bounds = array<i64: 1, 8, 128>}, {transform_indices = @transform_8, window_bounds = array<i64: 1, 8, 128>}]} {
    %c0 = arith.constant 0 : index
    %c0_0 = arith.constant 0 : index
    %c0_1 = arith.constant 0 : index
    %0 = vector.load %arg3[%c0, %c0_0, %c0_1] : memref<1x8x32xbf16, #tpu.memory_space<vmem>>, vector<1x8x32xbf16>
    %1 = vector.shape_cast %0 : vector<1x8x32xbf16> to vector<8x32xbf16>
    %c0_i32 = arith.constant 0 : i32
    %2 = arith.cmpi eq, %arg1, %c0_i32 : i32
    %c0_i32_2 = arith.constant 0 : i32
    %3 = arith.cmpi eq, %arg2, %c0_i32_2 : i32
    %4 = arith.andi %2, %3 : i1
    %5 = arith.extui %4 : i1 to i32
    %c0_i32_3 = arith.constant 0 : i32
    %6 = arith.cmpi ne, %5, %c0_i32_3 : i32
    scf.if %6 {
      %cst_11 = arith.constant 0xFF800000 : f32
      %18 = vector.broadcast %cst_11 : f32 to vector<8x1xf32>
      %c0_12 = arith.constant 0 : index
      %c0_13 = arith.constant 0 : index
      %19 = vector.load %arg12[%c0_12, %c0_13] : memref<8x1xf32, #tpu.memory_space<vmem>>, vector<8x1xf32>
      tpu.vector_store %arg12[%c0_12, %c0_13], %18 {strides = array<i32>} : memref<8x1xf32, #tpu.memory_space<vmem>>, vector<8x1xf32>,
      %cst_14 = arith.constant 0.000000e+00 : f32
      %20 = vector.broadcast %cst_14 : f32 to vector<8x1xf32>
      %c0_15 = arith.constant 0 : index
      %c0_16 = arith.constant 0 : index
      %21 = vector.load %arg13[%c0_15, %c0_16] : memref<8x1xf32, #tpu.memory_space<vmem>>, vector<8x1xf32>
      tpu.vector_store %arg13[%c0_15, %c0_16], %20 {strides = array<i32>} : memref<8x1xf32, #tpu.memory_space<vmem>>, vector<8x1xf32>,
      %22 = arith.extf %1 : vector<8x32xbf16> to vector<8x32xf32>
      %c0_17 = arith.constant 0 : index
      %c0_18 = arith.constant 0 : index
      %23 = vector.load %arg8[%c0_17, %c0_18] : memref<1x32xf32, #tpu.memory_space<vmem>>, vector<1x32xf32>
      %24 = vector.broadcast %23 : vector<1x32xf32> to vector<8x32xf32>
      %25 = arith.mulf %22, %24 : vector<8x32xf32>
      %cst_19 = arith.constant dense<0.000000e+00> : vector<8xf32>
      %26 = vector.multi_reduction <add>, %25, %cst_19 [1] : vector<8x32xf32> to vector<8xf32>
      %27 = vector.shape_cast %26 : vector<8xf32> to vector<8x1xf32>
      %c0_20 = arith.constant 0 : index
      %28 = memref.load %arg9[%c0_20] : memref<1xf32, #tpu.memory_space<smem>>
      %29 = vector.broadcast %28 : f32 to vector<8x1xf32>
      %30 = arith.addf %27, %29 : vector<8x1xf32>
      %31 = arith.negf %30 : vector<8x1xf32>
      %32 = math.exp %31 : vector<8x1xf32>
      %cst_21 = arith.constant 1.000000e+00 : f32
      %33 = vector.broadcast %cst_21 : f32 to vector<8x1xf32>
      %34 = arith.addf %33, %32 : vector<8x1xf32>
      %35 = arith.divf %33, %34 : vector<8x1xf32>
      %c0_22 = arith.constant 0 : index
      %c0_23 = arith.constant 0 : index
      %36 = vector.load %arg14[%c0_22, %c0_23] : memref<8x1xf32, #tpu.memory_space<vmem>>, vector<8x1xf32>
      tpu.vector_store %arg14[%c0_22, %c0_23], %35 {strides = array<i32>} : memref<8x1xf32, #tpu.memory_space<vmem>>, vector<8x1xf32>,
    } else {
    }
    %c0_4 = arith.constant 0 : index
    %c0_5 = arith.constant 0 : index
    %7 = vector.load %arg6[%c0_4, %c0_5] : memref<32x128xbf16, #tpu.memory_space<vmem>>, vector<32x128xbf16>
    %cst = arith.constant dense<0.000000e+00> : vector<8x128xf32>
    %8 = tpu.matmul %1, %7, %cst {dimension_numbers = #tpu.dot_dimension_numbers<[1], [0], [0], [1], [0, 0, 1, 1], [], []>} : vector<8x32xbf16>, vector<32x128xbf16>, vector<8x128xf32> -> vector<8x128xf32>
    %c0_6 = arith.constant 0 : index
    %c0_7 = arith.constant 0 : index
    %9 = vector.load %arg7[%c0_6, %c0_7] : memref<1x128xf32, #tpu.memory_space<vmem>>, vector<1x128xf32>
    %10 = vector.broadcast %9 : vector<1x128xf32> to vector<8x128xf32>
    %11 = arith.addf %8, %10 : vector<8x128xf32>
    %c0_i32_8 = arith.constant 0 : i32
    %12 = arith.cmpi eq, %arg1, %c0_i32_8 : i32
    %13 = arith.extui %12 : i1 to i32
    %c0_i32_9 = arith.constant 0 : i32
    %14 = arith.cmpi ne, %13, %c0_i32_9 : i32
    scf.if %14 {
      %c0_11 = arith.constant 0 : index
      %c0_12 = arith.constant 0 : index
      %18 = vector.load %arg12[%c0_11, %c0_12] : memref<8x1xf32, #tpu.memory_space<vmem>>, vector<8x1xf32>
      %cst_13 = arith.constant dense<0xFF800000> : vector<8xf32>
      %19 = vector.multi_reduction <maximumf>, %11, %cst_13 [1] : vector<8x128xf32> to vector<8xf32>
      %20 = vector.shape_cast %19 : vector<8xf32> to vector<8x1xf32>
      %21 = arith.maximumf %18, %20 : vector<8x1xf32>
      %c0_14 = arith.constant 0 : index
      %c0_15 = arith.constant 0 : index
      %22 = vector.load %arg13[%c0_14, %c0_15] : memref<8x1xf32, #tpu.memory_space<vmem>>, vector<8x1xf32>
      %23 = arith.subf %18, %21 : vector<8x1xf32>
      %24 = math.exp %23 : vector<8x1xf32>
      %25 = arith.mulf %22, %24 : vector<8x1xf32>
      %26 = vector.broadcast %21 : vector<8x1xf32> to vector<8x128xf32>
      %27 = arith.subf %11, %26 : vector<8x128xf32>
      %28 = math.exp %27 : vector<8x128xf32>
      %cst_16 = arith.constant dense<0.000000e+00> : vector<8xf32>
      %29 = vector.multi_reduction <add>, %28, %cst_16 [1] : vector<8x128xf32> to vector<8xf32>
      %30 = vector.shape_cast %29 : vector<8xf32> to vector<8x1xf32>
      %31 = arith.addf %25, %30 : vector<8x1xf32>
      %c0_17 = arith.constant 0 : index
      %c0_18 = arith.constant 0 : index
      %32 = vector.load %arg13[%c0_17, %c0_18] : memref<8x1xf32, #tpu.memory_space<vmem>>, vector<8x1xf32>
      tpu.vector_store %arg13[%c0_17, %c0_18], %31 {strides = array<i32>} : memref<8x1xf32, #tpu.memory_space<vmem>>, vector<8x1xf32>,
      %c0_19 = arith.constant 0 : index
      %c0_20 = arith.constant 0 : index
      %33 = vector.load %arg12[%c0_19, %c0_20] : memref<8x1xf32, #tpu.memory_space<vmem>>, vector<8x1xf32>
      tpu.vector_store %arg12[%c0_19, %c0_20], %21 {strides = array<i32>} : memref<8x1xf32, #tpu.memory_space<vmem>>, vector<8x1xf32>,
    } else {
    }
    %c1_i32 = arith.constant 1 : i32
    %15 = arith.cmpi eq, %arg1, %c1_i32 : i32
    %16 = arith.extui %15 : i1 to i32
    %c0_i32_10 = arith.constant 0 : i32
    %17 = arith.cmpi ne, %16, %c0_i32_10 : i32
    scf.if %17 {
      %c0_11 = arith.constant 0 : index
      %c0_12 = arith.constant 0 : index
      %18 = vector.load %arg14[%c0_11, %c0_12] : memref<8x1xf32, #tpu.memory_space<vmem>>, vector<8x1xf32>
      %c0_13 = arith.constant 0 : index
      %c0_14 = arith.constant 0 : index
      %19 = vector.load %arg13[%c0_13, %c0_14] : memref<8x1xf32, #tpu.memory_space<vmem>>, vector<8x1xf32>
      %20 = tpu.reciprocal %19 : vector<8x1xf32> -> vector<8x1xf32>
      %21 = arith.mulf %18, %20 : vector<8x1xf32>
      %c0_15 = arith.constant 0 : index
      %c0_16 = arith.constant 0 : index
      %22 = vector.load %arg12[%c0_15, %c0_16] : memref<8x1xf32, #tpu.memory_space<vmem>>, vector<8x1xf32>
      %23 = vector.broadcast %22 : vector<8x1xf32> to vector<8x128xf32>
      %24 = arith.subf %11, %23 : vector<8x128xf32>
      %25 = math.exp %24 : vector<8x128xf32>
      %26 = vector.broadcast %21 : vector<8x1xf32> to vector<8x128xf32>
      %27 = arith.mulf %25, %26 : vector<8x128xf32>
      %28 = vector.shape_cast %27 : vector<8x128xf32> to vector<1x8x128xf32>
      %c0_17 = arith.constant 0 : index
      %c0_18 = arith.constant 0 : index
      %c0_19 = arith.constant 0 : index
      %29 = vector.load %arg10[%c0_17, %c0_18, %c0_19] : memref<1x8x128xf32, #tpu.memory_space<vmem>>, vector<1x8x128xf32>
      tpu.vector_store %arg10[%c0_17, %c0_18, %c0_19], %28 {strides = array<i32>} : memref<1x8x128xf32, #tpu.memory_space<vmem>>, vector<1x8x128xf32>,
      %c0_i32_20 = arith.constant 0 : i32
      %30 = arith.cmpi eq, %arg2, %c0_i32_20 : i32
      %31 = arith.extui %30 : i1 to i32
      %c0_i32_21 = arith.constant 0 : i32
      %32 = arith.cmpi ne, %31, %c0_i32_21 : i32
      scf.if %32 {
        %c0_22 = arith.constant 0 : index
        %c0_23 = arith.constant 0 : index
        %c0_24 = arith.constant 0 : index
        %33 = vector.load %arg4[%c0_22, %c0_23, %c0_24] : memref<1x8x16xbf16, #tpu.memory_space<vmem>>, vector<1x8x16xbf16>
        %c0_25 = arith.constant 0 : index
        %c0_26 = arith.constant 0 : index
        %c0_27 = arith.constant 0 : index
        %34 = vector.load %arg5[%c0_25, %c0_26, %c0_27] : memref<1x16x128xbf16, #tpu.memory_space<vmem>>, vector<1x16x128xbf16>
        "tpu.trace_start"() <{level = 10 : i32, message = "bts,bsv->btv"}> : () -> ()
        %cst_28 = arith.constant dense<0.000000e+00> : vector<1x8x128xf32>
        %35 = tpu.matmul %33, %34, %cst_28 {dimension_numbers = #tpu.dot_dimension_numbers<[2], [1], [1], [2], [0, 0, 0, 1, 1, 2], [0], [0]>} : vector<1x8x16xbf16>, vector<1x16x128xbf16>, vector<1x8x128xf32> -> vector<1x8x128xf32>
        "tpu.trace_stop"() : () -> ()
        %c0_29 = arith.constant 0 : index
        %c0_30 = arith.constant 0 : index
        %36 = vector.load %arg14[%c0_29, %c0_30] : memref<8x1xf32, #tpu.memory_space<vmem>>, vector<8x1xf32>
        %cst_31 = arith.constant 1.000000e+00 : f32
        %37 = vector.broadcast %cst_31 : f32 to vector<8x1xf32>
        %38 = arith.subf %37, %36 : vector<8x1xf32>
        %39 = vector.shape_cast %38 : vector<8x1xf32> to vector<1x8x1xf32>
        %40 = vector.broadcast %39 : vector<1x8x1xf32> to vector<1x8x128xf32>
        %41 = arith.mulf %35, %40 : vector<1x8x128xf32>
        %c0_32 = arith.constant 0 : index
        %c0_33 = arith.constant 0 : index
        %c0_34 = arith.constant 0 : index
        %42 = vector.load %arg11[%c0_32, %c0_33, %c0_34] : memref<1x8x128xf32, #tpu.memory_space<vmem>>, vector<1x8x128xf32>
        tpu.vector_store %arg11[%c0_32, %c0_33, %c0_34], %41 {strides = array<i32>} : memref<1x8x128xf32, #tpu.memory_space<vmem>>, vector<1x8x128xf32>,
      } else {
      }
    } else {
    }
    return
  }
  func.func @transform_0(%arg0: i32, %arg1: i32, %arg2: i32) -> (i32, i32, i32) {
    %c0_i32 = arith.constant 0 : i32
    %c0_i32_0 = arith.constant 0 : i32
    %c0_i32_1 = arith.constant 0 : i32
    return %arg0, %c0_i32, %c0_i32_0 : i32, i32, i32
  }
  func.func @transform_1(%arg0: i32, %arg1: i32, %arg2: i32) -> (i32, i32, i32) {
    %c0_i32 = arith.constant 0 : i32
    %c0_i32_0 = arith.constant 0 : i32
    %c0_i32_1 = arith.constant 0 : i32
    return %arg0, %c0_i32, %c0_i32_0 : i32, i32, i32
  }
  func.func @transform_2(%arg0: i32, %arg1: i32, %arg2: i32) -> (i32, i32, i32) {
    %c0_i32 = arith.constant 0 : i32
    %c0_i32_0 = arith.constant 0 : i32
    %c0_i32_1 = arith.constant 0 : i32
    return %arg0, %c0_i32, %c0_i32_0 : i32, i32, i32
  }
  func.func @transform_3(%arg0: i32, %arg1: i32, %arg2: i32) -> (i32, i32) {
    %c0_i32 = arith.constant 0 : i32
    %c0_i32_0 = arith.constant 0 : i32
    return %c0_i32, %arg2 : i32, i32
  }
  func.func @transform_4(%arg0: i32, %arg1: i32, %arg2: i32) -> (i32, i32) {
    %c0_i32 = arith.constant 0 : i32
    %c0_i32_0 = arith.constant 0 : i32
    return %c0_i32, %arg2 : i32, i32
  }
  func.func @transform_5(%arg0: i32, %arg1: i32, %arg2: i32) -> (i32, i32) {
    %c0_i32 = arith.constant 0 : i32
    %c0_i32_0 = arith.constant 0 : i32
    %c0_i32_1 = arith.constant 0 : i32
    return %c0_i32, %c0_i32_0 : i32, i32
  }
  func.func @transform_6(%arg0: i32, %arg1: i32, %arg2: i32) -> i32 {
    %c0_i32 = arith.constant 0 : i32
    %c0_i32_0 = arith.constant 0 : i32
    return %c0_i32 : i32
  }
  func.func @transform_7(%arg0: i32, %arg1: i32, %arg2: i32) -> (i32, i32, i32) {
    %c0_i32 = arith.constant 0 : i32
    %c0_i32_0 = arith.constant 0 : i32
    return %arg0, %c0_i32, %arg2 : i32, i32, i32
  }
  func.func @transform_8(%arg0: i32, %arg1: i32, %arg2: i32) -> (i32, i32, i32) {
    %c0_i32 = arith.constant 0 : i32
    %c0_i32_0 = arith.constant 0 : i32
    %c0_i32_1 = arith.constant 0 : i32
    return %arg0, %c0_i32, %c0_i32_0 : i32, i32, i32
  }
}

</mosaic_0001>

<llo_original>
// kernel: tpu_custom_call.1
$region0: #{tpu_custom_call.1}
  #allocation0 [shape = 'u32[]', space=smem, size = 0x4, offset = 0x4, fixed_abs, tag = 'smem constant byte address 0x4 - core index']
  #allocation1 [shape = 'u32[144,128]{1,0:T(1,128)}', space=vmem, size = 0x12000, scoped, tag = 'internal scratch']
  #allocation2 [shape = 'f32[8,1]{1,0:T(8,128)}', space=vmem, size = 0x1000, scoped, tag = 'scratch operand']
  #allocation3 [shape = 'f32[8,1]{1,0:T(8,128)}', space=vmem, size = 0x1000, scoped, tag = 'scratch operand']
  #allocation4 [shape = 'f32[8,1]{1,0:T(8,128)}', space=vmem, size = 0x1000, scoped, tag = 'scratch operand']
  #allocation5 [shape = 'f32[1]{0:T(128)S(6)}', space=smem, size = 0x200, scoped, tag = 'scoped memory for tpu_custom_call.1']
  %s0 = inlined_call_operand.hbm [shape: bf16[2,8,32], index: 0, kind: input, shape index: {}]
  %s1 = inlined_call_operand.hbm [shape: bf16[2,8,16], index: 1, kind: input, shape index: {}]
  %s2 = inlined_call_operand.hbm [shape: bf16[2,16,128], index: 2, kind: input, shape index: {}]
  %s3 = inlined_call_operand.hbm [shape: bf16[32,128], index: 3, kind: input, shape index: {}]
  %s4 = inlined_call_operand.hbm [shape: f32[1,128], index: 4, kind: input, shape index: {}]
  %s5 = inlined_call_operand.hbm [shape: f32[1,32], index: 5, kind: input, shape index: {}]
  %s6 = inlined_call_operand.<no memory space> [shape: f32[1], index: 6, kind: input, shape index: {}]
  %s7 = inlined_call_operand.hbm [shape: f32[2,8,128], index: 7, kind: output, shape index: {0}]
  %s8 = inlined_call_operand.hbm [shape: f32[2,8,128], index: 8, kind: output, shape index: {1}]
  %9 = xla_tuple %s7, %s8
  %s10 = sld [smem:[#allocation0]]
  $region109: #{tpu_custom_call.1} parent=0
    _
  %s12 = ssub.s32 1, %s10
  %s13 = scalar_select 0, %s12, %s10
  %14 = sst [smem:[#allocation5]] %s6
  $region1: #{tpu_custom_call.1} parent=0
    #allocation6 [shape = 'u8[4096]{0}', space=vmem, size = 0x1000, scoped, tag = 'input window, operand 0']
    #allocation7 [shape = 's32[2]{0}', space=sflag, size = 0x8, scoped, tag = 'scoped memory for tpu_custom_call.1']
    #allocation8 [shape = 's32[2]{0}', space=sflag, size = 0x8, scoped, tag = 'scoped memory for tpu_custom_call.1']
    #allocation9 [shape = 'u8[4096]{0}', space=vmem, size = 0x1000, scoped, tag = 'input window, operand 1']
    #allocation10 [shape = 's32[2]{0}', space=sflag, size = 0x8, scoped, tag = 'scoped memory for tpu_custom_call.1']
    #allocation11 [shape = 'u8[8192]{0}', space=vmem, size = 0x2000, scoped, tag = 'input window, operand 2']
    #allocation12 [shape = 'u8[8192]{0}', space=vmem, size = 0x2000, scoped, tag = 'input window, operand 3, single buffered']
    #allocation13 [shape = 's32[1]{0}', space=sflag, size = 0x4, scoped, tag = 'scoped memory for tpu_custom_call.1']
    #allocation14 [shape = 'u8[512]{0}', space=vmem, size = 0x400, scoped, tag = 'input window, operand 4, single buffered']
    #allocation15 [shape = 'u8[512]{0}', space=vmem, size = 0x400, scoped, tag = 'input window, operand 5, single buffered']
    #allocation16 [shape = 's32[1]{0}', space=sflag, size = 0x4, scoped, tag = 'scoped memory for tpu_custom_call.1']
    #allocation17 [shape = 'u8[8192]{0}', space=vmem, size = 0x2000, scoped, tag = 'output window, operand 0']
    #allocation18 [shape = 'u8[8192]{0}', space=vmem, size = 0x2000, scoped, tag = 'output window, operand 1']
    #allocation19 [shape = 's32[2]{0}', space=sflag, size = 0x8, scoped, tag = 'scoped memory for tpu_custom_call.1']
    %15 = vsyncpa [#allocation7], 0
    %s16 = scalar_lea.sflag [#allocation7], 1
    %17 = vsyncpa %s16, 0
    %18 = vsyncpa [#allocation10], 0
    %s19 = scalar_lea.sflag [#allocation10], 1
    %20 = vsyncpa %s19, 0
    %21 = vsyncpa [#allocation13], 0
    %22 = vsyncpa [#allocation16], 0
    %23 = vsyncpa [#allocation8], 0
    %s24 = scalar_lea.sflag [#allocation8], 1
    %25 = vsyncpa %s24, 0
    %26 = vsyncpa [#allocation19], 0
    %s27 = scalar_lea.sflag [#allocation19], 1
    %28 = vsyncpa %s27, 0
    loop: start=0, step=1, limit=6
    $region2: #{tpu_custom_call.1} parent=1 // loop_pre_header
      _
    $region3: #{tpu_custom_call.1} parent=1 // loop_header
      %s30 = sphi 0, %s34
      %p31 = scmp.ge.s32.totalorder %s30, 6
      %s37 = sphi 0, %s56
      %s38 = sphi 0, %s52
      %s39 = sphi 0, %s48
      %s40 = sphi 0, %s37
      %s41 = sphi 0, %s38
      %s42 = sphi 0, %s39
      %s43 = sphi 0, %s40
      %s44 = sphi 0, %s41
      %s45 = sphi 0, %s42
      %s59 = sphi 0, %s61
      %s62 = sphi 0, %s59
      %s63 = sphi 0, %s62
      %s79 = sphi 0, %s63
      %s85 = sphi 0, %s87
      %s88 = sphi 0, %s85
      %s89 = sphi 0, %s88
      %s105 = sphi 0, %s89
      %s111 = sphi 0, %s113
      %s114 = sphi 0, %s111
      %s115 = sphi 0, %s114
      %s131 = sphi 0, %s115
      %s137 = sphi 0, %s139
      %s140 = sphi 0, %s137
      %s141 = sphi 0, %s140
      %s157 = sphi 0, %s141
      %s163 = sphi 0, %s165
      %s166 = sphi 0, %s163
      %s167 = sphi 0, %s166
      %s183 = sphi 0, %s167
      %s187 = sphi 0, %s187
      %s189 = sphi 0, %s187
      %s190 = sphi 0, %s189
      %s204 = sphi 0, %s190
      %s208 = sphi 0, %s208
      %s210 = sphi 0, %s208
      %s211 = sphi 0, %s210
      %s225 = sphi 0, %s211
      %s233 = sphi 0, %s235
      %s236 = sphi 0, %s233
      %s237 = sphi 0, %s236
      %s253 = sphi 0, %s237
      %s259 = sphi 0, %s261
      %s262 = sphi 0, %s259
      %s263 = sphi 0, %s262
      %s279 = sphi 0, %s263
    $region4: #{tpu_custom_call.1} parent=1 // loop_header_branch
      %33 = sbr.rel (%p31) target = $region8
    $region5: #{tpu_custom_call.1} parent=1 // loop_body
      %s35 = ssub.s32 %s30, 1
      %s36 = ssub.s32 %s30, 2
      %s46 = sadd.s32 1, %s39
      %p47 = scmp.ge.s32.totalorder %s46, 1
      %s48 = scalar_select %p47, 0, %s46
      %s49 = sadd.s32 1, %s38
      %s50 = scalar_select %p47, %s49, %s38
      %p51 = scmp.ge.s32.totalorder %s50, 2
      %s52 = scalar_select %p51, 0, %s50
      %s53 = sadd.s32 1, %s37
      %s54 = scalar_select %p51, %s53, %s37
      %p55 = scmp.ge.s32.totalorder %s54, 2
      %s56 = scalar_select %p55, 0, %s54
      %s57 = ssub.s32 %s37, %s56
      %p58 = scmp.eq.s32.totalorder %s57, 0
      %s60 = sadd.s32 %s59, 1
      %s61 = scalar_select %p58, %s59, %s60
      %p64 = pneg %p58
      %p65 = scmp.eq.s32.totalorder %s30, 3
      %p66 = por %p64, %p65
      %p67 = scmp.ne.s32.totalorder %s59, %s62
      %p68 = scmp.eq.s32.totalorder %s30, 0
      %p69 = por %p67, %p68
      %p70 = scmp.ne.s32.totalorder %s59, %s62
      %p71 = scmp.eq.s32.totalorder %s35, 3
      %p72 = por %p70, %p71
      %p73 = scmp.ne.s32.totalorder %s62, %s63
      %p74 = scmp.eq.s32.totalorder %s35, 0
      %p75 = por %p73, %p74
      %p76 = scmp.ne.s32.totalorder %s62, %s63
      %p77 = scmp.eq.s32.totalorder %s36, 3
      %p78 = por %p76, %p77
      %p80 = scmp.ne.s32.totalorder %s63, %s79
      %p81 = scmp.eq.s32.totalorder %s36, 0
      %p82 = por %p80, %p81
      %s83 = ssub.s32 %s37, %s56
      %p84 = scmp.eq.s32.totalorder %s83, 0
      %s86 = sadd.s32 %s85, 1
      %s87 = scalar_select %p84, %s85, %s86
      %p90 = pneg %p84
      %p91 = scmp.eq.s32.totalorder %s30, 3
      %p92 = por %p90, %p91
      %p93 = scmp.ne.s32.totalorder %s85, %s88
      %p94 = scmp.eq.s32.totalorder %s30, 0
      %p95 = por %p93, %p94
      %p96 = scmp.ne.s32.totalorder %s85, %s88
      %p97 = scmp.eq.s32.totalorder %s35, 3
      %p98 = por %p96, %p97
      %p99 = scmp.ne.s32.totalorder %s88, %s89
      %p100 = scmp.eq.s32.totalorder %s35, 0
      %p101 = por %p99, %p100
      %p102 = scmp.ne.s32.totalorder %s88, %s89
      %p103 = scmp.eq.s32.totalorder %s36, 3
      %p104 = por %p102, %p103
      %p106 = scmp.ne.s32.totalorder %s89, %s105
      %p107 = scmp.eq.s32.totalorder %s36, 0
      %p108 = por %p106, %p107
      %s109 = ssub.s32 %s37, %s56
      %p110 = scmp.eq.s32.totalorder %s109, 0
      %s112 = sadd.s32 %s111, 1
      %s113 = scalar_select %p110, %s111, %s112
      %p116 = pneg %p110
      %p117 = scmp.eq.s32.totalorder %s30, 3
      %p118 = por %p116, %p117
      %p119 = scmp.ne.s32.totalorder %s111, %s114
      %p120 = scmp.eq.s32.totalorder %s30, 0
      %p121 = por %p119, %p120
      %p122 = scmp.ne.s32.totalorder %s111, %s114
      %p123 = scmp.eq.s32.totalorder %s35, 3
      %p124 = por %p122, %p123
      %p125 = scmp.ne.s32.totalorder %s114, %s115
      %p126 = scmp.eq.s32.totalorder %s35, 0
      %p127 = por %p125, %p126
      %p128 = scmp.ne.s32.totalorder %s114, %s115
      %p129 = scmp.eq.s32.totalorder %s36, 3
      %p130 = por %p128, %p129
      %p132 = scmp.ne.s32.totalorder %s115, %s131
      %p133 = scmp.eq.s32.totalorder %s36, 0
      %p134 = por %p132, %p133
      %s135 = ssub.s32 %s39, %s48
      %p136 = scmp.eq.s32.totalorder %s135, 0
      %s138 = sadd.s32 %s137, 1
      %s139 = scalar_select %p136, %s137, %s138
      %p142 = pneg %p136
      %p143 = scmp.eq.s32.totalorder %s30, 3
      %p144 = por %p142, %p143
      %p145 = scmp.ne.s32.totalorder %s137, %s140
      %p146 = scmp.eq.s32.totalorder %s30, 0
      %p147 = por %p145, %p146
      %p148 = scmp.ne.s32.totalorder %s137, %s140
      %p149 = scmp.eq.s32.totalorder %s35, 3
      %p150 = por %p148, %p149
      %p151 = scmp.ne.s32.totalorder %s140, %s141
      %p152 = scmp.eq.s32.totalorder %s35, 0
      %p153 = por %p151, %p152
      %p154 = scmp.ne.s32.totalorder %s140, %s141
      %p155 = scmp.eq.s32.totalorder %s36, 3
      %p156 = por %p154, %p155
      %p158 = scmp.ne.s32.totalorder %s141, %s157
      %p159 = scmp.eq.s32.totalorder %s36, 0
      %p160 = por %p158, %p159
      %s161 = ssub.s32 %s39, %s48
      %p162 = scmp.eq.s32.totalorder %s161, 0
      %s164 = sadd.s32 %s163, 1
      %s165 = scalar_select %p162, %s163, %s164
      %p168 = pneg %p162
      %p169 = scmp.eq.s32.totalorder %s30, 3
      %p170 = por %p168, %p169
      %p171 = scmp.ne.s32.totalorder %s163, %s166
      %p172 = scmp.eq.s32.totalorder %s30, 0
      %p173 = por %p171, %p172
      %p174 = scmp.ne.s32.totalorder %s163, %s166
      %p175 = scmp.eq.s32.totalorder %s35, 3
      %p176 = por %p174, %p175
      %p177 = scmp.ne.s32.totalorder %s166, %s167
      %p178 = scmp.eq.s32.totalorder %s35, 0
      %p179 = por %p177, %p178
      %p180 = scmp.ne.s32.totalorder %s166, %s167
      %p181 = scmp.eq.s32.totalorder %s36, 3
      %p182 = por %p180, %p181
      %p184 = scmp.ne.s32.totalorder %s167, %s183
      %p185 = scmp.eq.s32.totalorder %s36, 0
      %p186 = por %p184, %p185
      %s188 = sadd.s32 %s187, 1
      %p191 = scmp.eq.s32.totalorder %s30, 3
      %p192 = scmp.ne.s32.totalorder %s187, %s189
      %p193 = scmp.eq.s32.totalorder %s30, 0
      %p194 = por %p192, %p193
      %p195 = scmp.ne.s32.totalorder %s187, %s189
      %p196 = scmp.eq.s32.totalorder %s35, 3
      %p197 = por %p195, %p196
      %p198 = scmp.ne.s32.totalorder %s189, %s190
      %p199 = scmp.eq.s32.totalorder %s35, 0
      %p200 = por %p198, %p199
      %p201 = scmp.ne.s32.totalorder %s189, %s190
      %p202 = scmp.eq.s32.totalorder %s36, 3
      %p203 = por %p201, %p202
      %p205 = scmp.ne.s32.totalorder %s190, %s204
      %p206 = scmp.eq.s32.totalorder %s36, 0
      %p207 = por %p205, %p206
      %s209 = sadd.s32 %s208, 1
      %p212 = scmp.eq.s32.totalorder %s30, 3
      %p213 = scmp.ne.s32.totalorder %s208, %s210
      %p214 = scmp.eq.s32.totalorder %s30, 0
      %p215 = por %p213, %p214
      %p216 = scmp.ne.s32.totalorder %s208, %s210
      %p217 = scmp.eq.s32.totalorder %s35, 3
      %p218 = por %p216, %p217
      %p219 = scmp.ne.s32.totalorder %s210, %s211
      %p220 = scmp.eq.s32.totalorder %s35, 0
      %p221 = por %p219, %p220
      %p222 = scmp.ne.s32.totalorder %s210, %s211
      %p223 = scmp.eq.s32.totalorder %s36, 3
      %p224 = por %p222, %p223
      %p226 = scmp.ne.s32.totalorder %s211, %s225
      %p227 = scmp.eq.s32.totalorder %s36, 0
      %p228 = por %p226, %p227
      %s229 = ssub.s32 %s37, %s56
      %s230 = ssub.s32 %s39, %s48
      %s231 = sor.u32 %s229, %s230
      %p232 = scmp.eq.s32.totalorder %s231, 0
      %s234 = sadd.s32 %s233, 1
      %s235 = scalar_select %p232, %s233, %s234
      %p238 = pneg %p232
      %p239 = scmp.eq.s32.totalorder %s30, 3
      %p240 = por %p238, %p239
      %p241 = scmp.ne.s32.totalorder %s233, %s236
      %p242 = scmp.eq.s32.totalorder %s30, 0
      %p243 = por %p241, %p242
      %p244 = scmp.ne.s32.totalorder %s233, %s236
      %p245 = scmp.eq.s32.totalorder %s35, 3
      %p246 = por %p244, %p245
      %p247 = scmp.ne.s32.totalorder %s236, %s237
      %p248 = scmp.eq.s32.totalorder %s35, 0
      %p249 = por %p247, %p248
      %p250 = scmp.ne.s32.totalorder %s236, %s237
      %p251 = scmp.eq.s32.totalorder %s36, 3
      %p252 = por %p250, %p251
      %p254 = scmp.ne.s32.totalorder %s237, %s253
      %p255 = scmp.eq.s32.totalorder %s36, 0
      %p256 = por %p254, %p255
      %s257 = ssub.s32 %s37, %s56
      %p258 = scmp.eq.s32.totalorder %s257, 0
      %s260 = sadd.s32 %s259, 1
      %s261 = scalar_select %p258, %s259, %s260
      %p264 = pneg %p258
      %p265 = scmp.eq.s32.totalorder %s30, 3
      %p266 = por %p264, %p265
      %p267 = scmp.ne.s32.totalorder %s259, %s262
      %p268 = scmp.eq.s32.totalorder %s30, 0
      %p269 = por %p267, %p268
      %p270 = scmp.ne.s32.totalorder %s259, %s262
      %p271 = scmp.eq.s32.totalorder %s35, 3
      %p272 = por %p270, %p271
      %p273 = scmp.ne.s32.totalorder %s262, %s263
      %p274 = scmp.eq.s32.totalorder %s35, 0
      %p275 = por %p273, %p274
      %p276 = scmp.ne.s32.totalorder %s262, %s263
      %p277 = scmp.eq.s32.totalorder %s36, 3
      %p278 = por %p276, %p277
      %p280 = scmp.ne.s32.totalorder %s263, %s279
      %p281 = scmp.eq.s32.totalorder %s36, 0
      %p282 = por %p280, %p281
      %p283 = scmp.le.s32.totalorder 1, %s30
      %p284 = scmp.lt.s32.totalorder %s30, 5
      %p285 = pnand %p283, %p284
      %p286 = pneg %p285
      // Predicated region
      $region9: #{tpu_custom_call.1} parent=5 // pred_check
        _
      $region10: #{tpu_custom_call.1} parent=5 // pred_check_branch
        %288 = sbr.rel (%p285) target = $region12
      $region11: #{tpu_custom_call.1} parent=5 // pred_region
        %s289 = ssub.s32 %s30, 1
        // Predicated region
        $region13: #{tpu_custom_call.1} parent=11 // pred_check
          %p290 = pneg %p153
        $region14: #{tpu_custom_call.1} parent=11 // pred_check_branch
          %292 = sbr.rel (%p290) target = $region16
        $region15: #{tpu_custom_call.1} parent=11 // pred_region
          %s294 = ssub.s32 256, 256
          %295 = vsyncadd [#allocation13], %s294
          %s296 = smul.addr %s42, 64
          %s297 = scalar_lea.hbm %s3, %s296
          %s298 = sshll.u32 [#allocation12], 4
          %s299 = int_to_ptr.vmem [resolvable:$true] %s298
          %304 = dma.hbm_to_vmem [thread:$0]  %s297, 256, %s299, [#allocation13], 64, 64, 4
        $region16: #{tpu_custom_call.1} parent=11 // pred_fallthru
          _
        // Predicated region
        $region17: #{tpu_custom_call.1} parent=11 // pred_check
          %p305 = pneg %p179
        $region18: #{tpu_custom_call.1} parent=11 // pred_check_branch
          %307 = sbr.rel (%p305) target = $region20
        $region19: #{tpu_custom_call.1} parent=11 // pred_region
          %s309 = ssub.s32 16, 16
          %310 = vsyncadd [#allocation13], %s309
          %s311 = smul.addr %s42, 16
          %s312 = scalar_lea.hbm %s4, %s311
          %s314 = sshll.u32 [#allocation14], 4
          %s315 = int_to_ptr.vmem [resolvable:$true] %s314
          %317 = dma.hbm_to_vmem [thread:$0]  %s312, 16, %s315, [#allocation13]
        $region20: #{tpu_custom_call.1} parent=11 // pred_fallthru
          _
        // Predicated region
        $region21: #{tpu_custom_call.1} parent=11 // pred_check
          %p318 = pneg %p200
        $region22: #{tpu_custom_call.1} parent=11 // pred_check_branch
          %320 = sbr.rel (%p318) target = $region24
        $region23: #{tpu_custom_call.1} parent=11 // pred_region
          %s322 = ssub.s32 16, 16
          %323 = vsyncadd [#allocation16], %s322
          %s325 = sshll.u32 [#allocation15], 4
          %s326 = int_to_ptr.vmem [resolvable:$true] %s325
          %328 = dma.hbm_to_vmem [thread:$0]  %s5, 16, %s326, [#allocation16]
        $region24: #{tpu_custom_call.1} parent=11 // pred_fallthru
          _
        // Predicated region
        $region25: #{tpu_custom_call.1} parent=11 // pred_check
          %p329 = pneg %p221
        $region26: #{tpu_custom_call.1} parent=11 // pred_check_branch
          %331 = sbr.rel (%p329) target = $region28
        $region27: #{tpu_custom_call.1} parent=11 // pred_region
          _
        $region28: #{tpu_custom_call.1} parent=11 // pred_fallthru
          _
      $region12: #{tpu_custom_call.1} parent=5 // pred_fallthru
        _
      %p332 = scmp.lt.s32.totalorder %s30, 4
      // Predicated region
      $region29: #{tpu_custom_call.1} parent=5 // pred_check
        %p333 = pneg %p332
      $region30: #{tpu_custom_call.1} parent=5 // pred_check_branch
        %335 = sbr.rel (%p333) target = $region32
      $region31: #{tpu_custom_call.1} parent=5 // pred_region
        // Predicated region
        $region33: #{tpu_custom_call.1} parent=31 // pred_check
          %p336 = pneg %p69
        $region34: #{tpu_custom_call.1} parent=31 // pred_check_branch
          %338 = sbr.rel (%p336) target = $region36
        $region35: #{tpu_custom_call.1} parent=31 // pred_region
          %s339 = sand.u32 %s59, 1
          %s340 = scalar_lea.sflag [#allocation7], %s339
          %s341 = sand.u32 %s59, 1
          %s342 = smul.addr %s341, 4
          %s343 = scalar_lea.vmem [#allocation6], %s342
          %s345 = ssub.s32 64, 64
          %346 = vsyncadd %s340, %s345
          %s347 = smul.addr %s37, 64
          %s348 = scalar_lea.hbm %s0, %s347
          %s350 = sshll.u32 %s343, 4
          %s351 = int_to_ptr.vmem [resolvable:$true] %s350
          %353 = dma.hbm_to_vmem [thread:$0]  %s348, 64, %s351, %s340
        $region36: #{tpu_custom_call.1} parent=31 // pred_fallthru
          _
        // Predicated region
        $region37: #{tpu_custom_call.1} parent=31 // pred_check
          %p354 = pneg %p95
        $region38: #{tpu_custom_call.1} parent=31 // pred_check_branch
          %356 = sbr.rel (%p354) target = $region40
        $region39: #{tpu_custom_call.1} parent=31 // pred_region
          %s357 = sand.u32 %s30, 1
          %s358 = scalar_lea.sflag [#allocation10], %s357
          %s359 = sand.u32 %s85, 1
          %s360 = smul.addr %s359, 4
          %s361 = scalar_lea.vmem [#allocation9], %s360
          %s363 = ssub.s32 64, 64
          %364 = vsyncadd %s358, %s363
          %s365 = smul.addr %s37, 64
          %s366 = scalar_lea.hbm %s1, %s365
          %s368 = sshll.u32 %s361, 4
          %s369 = int_to_ptr.vmem [resolvable:$true] %s368
          %371 = dma.hbm_to_vmem [thread:$0]  %s366, 64, %s369, %s358
        $region40: #{tpu_custom_call.1} parent=31 // pred_fallthru
          _
        // Predicated region
        $region41: #{tpu_custom_call.1} parent=31 // pred_check
          %p372 = pneg %p121
        $region42: #{tpu_custom_call.1} parent=31 // pred_check_branch
          %374 = sbr.rel (%p372) target = $region44
        $region43: #{tpu_custom_call.1} parent=31 // pred_region
          %s375 = sand.u32 %s30, 1
          %s376 = scalar_lea.sflag [#allocation10], %s375
          %s377 = sand.u32 %s111, 1
          %s378 = smul.addr %s377, 8
          %s379 = scalar_lea.vmem [#allocation11], %s378
          %s381 = ssub.s32 128, 128
          %382 = vsyncadd %s376, %s381
          %s383 = smul.addr %s37, 2
          %s384 = smul.addr %s383, 64
          %s385 = scalar_lea.hbm %s2, %s384
          %s386 = sshll.u32 %s379, 4
          %s387 = int_to_ptr.vmem [resolvable:$true] %s386
          %392 = dma.hbm_to_vmem [thread:$0]  %s385, 128, %s387, %s376, 64, 64, 4
        $region44: #{tpu_custom_call.1} parent=31 // pred_fallthru
          _
      $region32: #{tpu_custom_call.1} parent=5 // pred_fallthru
        _
      %p393 = scmp.le.s32.totalorder 1, %s30
      %p394 = scmp.lt.s32.totalorder %s30, 5
      %p395 = pnand %p393, %p394
      %p396 = pneg %p395
      // Predicated region
      $region45: #{tpu_custom_call.1} parent=5 // pred_check
        _
      $region46: #{tpu_custom_call.1} parent=5 // pred_check_branch
        %398 = sbr.rel (%p395) target = $region48
      $region47: #{tpu_custom_call.1} parent=5 // pred_region
        %s399 = ssub.s32 %s30, 1
        %s400 = sand.u32 %s62, 1
        %s401 = scalar_lea.sflag [#allocation7], %s400
        %s402 = sand.u32 %s62, 1
        %s403 = smul.addr %s402, 4
        %s404 = scalar_lea.vmem [#allocation6], %s403
        // Predicated region
        $region49: #{tpu_custom_call.1} parent=47 // pred_check
          %p405 = pneg %p75
        $region50: #{tpu_custom_call.1} parent=47 // pred_check_branch
          %407 = sbr.rel (%p405) target = $region52
        $region51: #{tpu_custom_call.1} parent=47 // pred_region
          %408 = dma.done %s401, 64
        $region52: #{tpu_custom_call.1} parent=47 // pred_fallthru
          _
        %s409 = sand.u32 %s35, 1
        %s410 = scalar_lea.sflag [#allocation10], %s409
        %s411 = sand.u32 %s88, 1
        %s412 = smul.addr %s411, 4
        %s413 = scalar_lea.vmem [#allocation9], %s412
        // Predicated region
        $region53: #{tpu_custom_call.1} parent=47 // pred_check
          %p414 = pneg %p101
        $region54: #{tpu_custom_call.1} parent=47 // pred_check_branch
          %416 = sbr.rel (%p414) target = $region56
        $region55: #{tpu_custom_call.1} parent=47 // pred_region
          %417 = dma.done %s410, 64
        $region56: #{tpu_custom_call.1} parent=47 // pred_fallthru
          _
        %s418 = sand.u32 %s35, 1
        %s419 = scalar_lea.sflag [#allocation10], %s418
        %s420 = sand.u32 %s114, 1
        %s421 = smul.addr %s420, 8
        %s422 = scalar_lea.vmem [#allocation11], %s421
        // Predicated region
        $region57: #{tpu_custom_call.1} parent=47 // pred_check
          %p423 = pneg %p127
        $region58: #{tpu_custom_call.1} parent=47 // pred_check_branch
          %425 = sbr.rel (%p423) target = $region60
        $region59: #{tpu_custom_call.1} parent=47 // pred_region
          %426 = dma.done %s419, 128
        $region60: #{tpu_custom_call.1} parent=47 // pred_fallthru
          _
        // Predicated region
        $region61: #{tpu_custom_call.1} parent=47 // pred_check
          %p427 = pneg %p153
        $region62: #{tpu_custom_call.1} parent=47 // pred_check_branch
          %429 = sbr.rel (%p427) target = $region64
        $region63: #{tpu_custom_call.1} parent=47 // pred_region
          %430 = dma.done [#allocation13], 256
        $region64: #{tpu_custom_call.1} parent=47 // pred_fallthru
          _
        // Predicated region
        $region65: #{tpu_custom_call.1} parent=47 // pred_check
          %p431 = pneg %p179
        $region66: #{tpu_custom_call.1} parent=47 // pred_check_branch
          %433 = sbr.rel (%p431) target = $region68
        $region67: #{tpu_custom_call.1} parent=47 // pred_region
          %434 = dma.done [#allocation13], 16
        $region68: #{tpu_custom_call.1} parent=47 // pred_fallthru
          _
        // Predicated region
        $region69: #{tpu_custom_call.1} parent=47 // pred_check
          %p435 = pneg %p200
        $region70: #{tpu_custom_call.1} parent=47 // pred_check_branch
          %437 = sbr.rel (%p435) target = $region72
        $region71: #{tpu_custom_call.1} parent=47 // pred_region
          %438 = dma.done [#allocation16], 16
        $region72: #{tpu_custom_call.1} parent=47 // pred_fallthru
          _
        %s439 = sand.u32 %s62, 1
        %s440 = scalar_lea.sflag [#allocation7], %s439
        %s441 = sand.u32 %s62, 1
        %s442 = smul.addr %s441, 4
        %s443 = scalar_lea.vmem [#allocation6], %s442
        %p444 = pneg %p75
        %p445 = pneg %p72
        %s446 = sand.u32 %s35, 1
        %s447 = scalar_lea.sflag [#allocation10], %s446
        %s448 = sand.u32 %s88, 1
        %s449 = smul.addr %s448, 4
        %s450 = scalar_lea.vmem [#allocation9], %s449
        %p451 = pneg %p101
        %p452 = pneg %p98
        %s453 = sand.u32 %s35, 1
        %s454 = scalar_lea.sflag [#allocation10], %s453
        %s455 = sand.u32 %s114, 1
        %s456 = smul.addr %s455, 8
        %s457 = scalar_lea.vmem [#allocation11], %s456
        %p458 = pneg %p127
        %p459 = pneg %p124
        %p460 = pneg %p153
        %p461 = pneg %p150
        %p462 = pneg %p179
        %p463 = pneg %p176
        %p464 = pneg %p200
        %p465 = pneg %p197
        %p466 = pneg %p221
        %p467 = pneg %p218
        %p468 = pneg %p249
        %p469 = pneg %p246
        %s470 = sand.u32 %s236, 1
        %s471 = scalar_lea.sflag [#allocation8], %s470
        %s472 = sand.u32 %s236, 1
        %s473 = smul.addr %s472, 8
        %s474 = scalar_lea.vmem [#allocation17], %s473
        %p475 = pneg %p275
        %p476 = pneg %p272
        %s477 = sand.u32 %s262, 1
        %s478 = scalar_lea.sflag [#allocation19], %s477
        %s479 = sand.u32 %s262, 1
        %s480 = smul.addr %s479, 8
        %s481 = scalar_lea.vmem [#allocation18], %s480
        %v483 = vld [vmem:[%s404] sm:$0xf]
        %p484 = scmp.eq.s32.totalorder %s41, 0
        %p485 = scmp.eq.s32.totalorder %s42, 0
        %p486 = pnand %p484, %p485
        %p487 = pneg %p486
        // Predicated region
        $region73: #{tpu_custom_call.1} parent=47 // pred_check
          _
        $region74: #{tpu_custom_call.1} parent=47 // pred_check_branch
          %489 = sbr.rel (%p486) target = $region76
        $region75: #{tpu_custom_call.1} parent=47 // pred_region
          %vm490 = vcmask 7168
          %491 = vst.msk [vmem:[#allocation2] sm:$0xff] %vm490, -inf
          %492 = vst.msk [vmem:[#allocation3] sm:$0xff] %vm490, 0.0
          %v493 = vunpack.c.l.bf16 %v483
          %v494 = vld [vmem:[#allocation15] sm:$0x1]
          %v496 = vlaneseq
          %v497 = vshrl.u32 %v496, 7
          %v498 = vsub.s32 0, %v497
          %v499 = vrot.slane %v494, %v498
          %v501 = vmul.f32 %v493, %v499
          %vm502 = vcmask 261120
          %v503 = vsel %vm502, %v501, 0.0
          %504 = vadd.xlane.f32.xlu0 %v503
          %v505 = vpop.xlane.xlu0 %504
          %s506 = sld [smem:[#allocation5]]
          %v507 = vstv %s506
          %v508 = vadd.f32 %v505, %v507
          %v509 = vxor.u32 %v508, 2147483648
          %v510 = vmul.f32 %v509, 1.442695
          %v511 = vpow.pop %v510
          %v512 = vadd.f32 %v511, 1.0
          %v513 = vrcp.pop %v512
          %v514 = vmul.f32 1.0, %v513
          %515 = vst.msk [vmem:[#allocation4] sm:$0xff] %vm490, %v514
        $region76: #{tpu_custom_call.1} parent=47 // pred_fallthru
          _
        %v516 = vld [vmem:[#allocation12] sm:$0xf]
        %v517 = vld [vmem:[#allocation12 + $0x4] sm:$0xf]
        %v518 = vld [vmem:[#allocation12 + $0x8] sm:$0xf]
        %v519 = vld [vmem:[#allocation12 + $0xc] sm:$0xf]
        %v520 = vld [vmem:[#allocation14] sm:$0x1]
        %v522 = vlaneseq
        %v523 = vshrl.u32 %v522, 7
        %v524 = vsub.s32 0, %v523
        %v525 = vrot.slane %v520, %v524
        %v531 = vunpack.c.l.b16 %v516
        %v532 = vunpack.c.l.b16 %v517
        %v533 = vunpack.c.l.b16 %v518
        %v534 = vunpack.c.l.b16 %v519
        %v535 = vpack.c.b16 %v532, %v531
        %v536 = vpack.c.b16 %v534, %v533
        %vm539 = vcmask 261120
        %v541 = vsel %vm539, %v483, 0
        %543 = vmatprep.subr.bf16.mxu0 0
        %544 = vmatpush1.bf16.msra.mxu0 %v535
        %545 = vmatprep.subr.bf16.mxu0 0
        %546 = vmatpush1.bf16.msra.mxu0 %v536
        %547 = vmatprep.subr.bf16.mxu0 0
        %548 = vmatpush1.bf16.msra.mxu0 0
        %549 = vmatprep.subr.bf16.mxu0 0
        %550 = vmatpush1.bf16.msra.mxu0 0
        %551 = vmatprep.subr.bf16.mxu0 0
        %552 = vmatpush1.bf16.msra.mxu0 0
        %553 = vmatprep.subr.bf16.mxu0 0
        %554 = vmatpush1.bf16.msra.mxu0 0
        %555 = vmatprep.subr.bf16.mxu0 0
        %556 = vmatpush1.bf16.msra.mxu0 0
        %557 = vmatprep.subr.bf16.mxu0 0
        %558 = vmatpush1.bf16.msra.mxu0 0
        %559 = vmatprep.subr.bf16.mxu0 0
        %560 = vmatpush1.bf16.msra.mxu0 0
        %561 = vmatprep.subr.bf16.mxu0 0
        %562 = vmatpush1.bf16.msra.mxu0 0
        %563 = vmatprep.subr.bf16.mxu0 0
        %564 = vmatpush1.bf16.msra.mxu0 0
        %565 = vmatprep.subr.bf16.mxu0 0
        %566 = vmatpush1.bf16.msra.mxu0 0
        %567 = vmatprep.subr.bf16.mxu0 0
        %568 = vmatpush1.bf16.msra.mxu0 0
        %569 = vmatprep.subr.bf16.mxu0 0
        %570 = vmatpush1.bf16.msra.mxu0 0
        %571 = vmatprep.subr.bf16.mxu0 0
        %572 = vmatpush1.bf16.msra.mxu0 0
        %573 = vmatprep.subr.bf16.mxu0 0
        %574 = vmatpush1.bf16.msra.mxu0 0
        %575 = vmatprep.mubr.bf16.mxu0 0
        %576 = vmatmul.mubr.bf16.gmra.mrb[0].mxu0 %v541
        %v577 = vpop.f32.mrb[0].mxu0
        %v578 = vadd.f32 %v525, %v577
        %v579 = vpop.f32.mrb[0].mxu0
        %v580 = vpop.f32.mrb[0].mxu0
        %v581 = vpop.f32.mrb[0].mxu0
        %582 = vdwg.mxu0
        // Predicated region
        $region77: #{tpu_custom_call.1} parent=47 // pred_check
          %p583 = pneg %p484
        $region78: #{tpu_custom_call.1} parent=47 // pred_check_branch
          %585 = sbr.rel (%p583) target = $region80
        $region79: #{tpu_custom_call.1} parent=47 // pred_region
          %v586 = vld [vmem:[#allocation2] sm:$0xff]
          %587 = vmax.xlane.f32.xlu0 %v578
          %v588 = vpop.xlane.xlu0 %587
          %v589 = vmax.f32 %v586, %v588
          %v590 = vld [vmem:[#allocation3] sm:$0xff]
          %v591 = vsub.f32 %v586, %v589
          %v592 = vmul.f32 %v591, 1.442695
          %v593 = vpow.pop %v592
          %v594 = vmul.f32 %v590, %v593
          %596 = vset.pattern.permute.xlu0 0
          %597 = vperm.xlu0 %596, %v589
          %v598 = vpop.permute.xlu0 %597
          %v600 = vsub.f32 %v578, %v598
          %v601 = vmul.f32 %v600, 1.442695
          %v602 = vpow.pop %v601
          %603 = vadd.xlane.f32.xlu0 %v602
          %v604 = vpop.xlane.xlu0 %603
          %v605 = vadd.f32 %v594, %v604
          %vm606 = vcmask 7168
          %607 = vst.msk [vmem:[#allocation3] sm:$0xff] %vm606, %v605
          %608 = vst.msk [vmem:[#allocation2] sm:$0xff] %vm606, %v589
        $region80: #{tpu_custom_call.1} parent=47 // pred_fallthru
          _
        %p609 = scmp.eq.s32.totalorder %s41, 1
        // Predicated region
        $region81: #{tpu_custom_call.1} parent=47 // pred_check
          %p610 = pneg %p609
        $region82: #{tpu_custom_call.1} parent=47 // pred_check_branch
          %612 = sbr.rel (%p610) target = $region84
        $region83: #{tpu_custom_call.1} parent=47 // pred_region
          %v613 = vld [vmem:[#allocation4] sm:$0xff]
          %v614 = vld [vmem:[#allocation3] sm:$0xff]
          %v615 = vrcp.pop %v614
          %v616 = vmul.f32 %v613, %v615
          %v617 = vld [vmem:[#allocation2] sm:$0xff]
          %619 = vset.pattern.permute.xlu0 0
          %620 = vperm.xlu0 %619, %v617
          %v621 = vpop.permute.xlu0 %620
          %v623 = vsub.f32 %v578, %v621
          %v624 = vmul.f32 %v623, 1.442695
          %v625 = vpow.pop %v624
          %627 = vset.pattern.permute.xlu0 0
          %628 = vperm.xlu0 %627, %v616
          %v629 = vpop.permute.xlu0 %628
          %v631 = vmul.f32 %v625, %v629
          %632 = vst [vmem:[%s474] sm:$0xff] %v631
          // Predicated region
          $region85: #{tpu_custom_call.1} parent=83 // pred_check
            %p633 = pneg %p485
          $region86: #{tpu_custom_call.1} parent=83 // pred_check_branch
            %635 = sbr.rel (%p633) target = $region88
          $region87: #{tpu_custom_call.1} parent=83 // pred_region
            %v636 = vld [vmem:[%s413] sm:$0xf]
            %v637 = vld [vmem:[%s422] sm:$0xf]
            %v638 = vld [vmem:[%s422 + $0x4] sm:$0xf]
            %v641 = vunpack.c.l.b16 %v637
            %v642 = vunpack.c.l.b16 %v638
            %v643 = vpack.c.b16 %v642, %v641
            %vm645 = vcmask 130048
            %v647 = vsel %vm645, %v636, 0
            %649 = vmatprep.subr.bf16.mxu0 0
            %650 = vmatpush1.bf16.msra.mxu0 %v643
            %651 = vmatprep.subr.bf16.mxu0 0
            %652 = vmatpush1.bf16.msra.mxu0 0
            %653 = vmatprep.subr.bf16.mxu0 0
            %654 = vmatpush1.bf16.msra.mxu0 0
            %655 = vmatprep.subr.bf16.mxu0 0
            %656 = vmatpush1.bf16.msra.mxu0 0
            %657 = vmatprep.subr.bf16.mxu0 0
            %658 = vmatpush1.bf16.msra.mxu0 0
            %659 = vmatprep.subr.bf16.mxu0 0
            %660 = vmatpush1.bf16.msra.mxu0 0
            %661 = vmatprep.subr.bf16.mxu0 0
            %662 = vmatpush1.bf16.msra.mxu0 0
            %663 = vmatprep.subr.bf16.mxu0 0
            %664 = vmatpush1.bf16.msra.mxu0 0
            %665 = vmatprep.subr.bf16.mxu0 0
            %666 = vmatpush1.bf16.msra.mxu0 0
            %667 = vmatprep.subr.bf16.mxu0 0
            %668 = vmatpush1.bf16.msra.mxu0 0
            %669 = vmatprep.subr.bf16.mxu0 0
            %670 = vmatpush1.bf16.msra.mxu0 0
            %671 = vmatprep.subr.bf16.mxu0 0
            %672 = vmatpush1.bf16.msra.mxu0 0
            %673 = vmatprep.subr.bf16.mxu0 0
            %674 = vmatpush1.bf16.msra.mxu0 0
            %675 = vmatprep.subr.bf16.mxu0 0
            %676 = vmatpush1.bf16.msra.mxu0 0
            %677 = vmatprep.subr.bf16.mxu0 0
            %678 = vmatpush1.bf16.msra.mxu0 0
            %679 = vmatprep.subr.bf16.mxu0 0
            %680 = vmatpush1.bf16.msra.mxu0 0
            %681 = vmatprep.mubr.bf16.mxu0 0
            %682 = vmatmul.mubr.bf16.gmra.mrb[0].mxu0 %v647
            %v683 = vpop.f32.mrb[0].mxu0
            %v684 = vadd.f32 0.0, %v683
            %v685 = vpop.f32.mrb[0].mxu0
            %v686 = vpop.f32.mrb[0].mxu0
            %v687 = vpop.f32.mrb[0].mxu0
            %688 = vdwg.mxu0
            %v689 = vld [vmem:[#allocation4] sm:$0xff]
            %v690 = vsub.f32 1.0, %v689
            %692 = vset.pattern.permute.xlu0 0
            %693 = vperm.xlu0 %692, %v690
            %v694 = vpop.permute.xlu0 %693
            %v696 = vmul.f32 %v684, %v694
            %697 = vst [vmem:[%s481] sm:$0xff] %v696
          $region88: #{tpu_custom_call.1} parent=83 // pred_fallthru
            _
        $region84: #{tpu_custom_call.1} parent=47 // pred_fallthru
          _
        %s698 = sand.u32 %s236, 1
        %s699 = scalar_lea.sflag [#allocation8], %s698
        %s700 = sand.u32 %s236, 1
        %s701 = smul.addr %s700, 8
        %s702 = scalar_lea.vmem [#allocation17], %s701
        %s703 = sand.u32 %s262, 1
        %s704 = scalar_lea.sflag [#allocation19], %s703
        %s705 = sand.u32 %s262, 1
        %s706 = smul.addr %s705, 8
        %s707 = scalar_lea.vmem [#allocation18], %s706
        // Predicated region
        $region89: #{tpu_custom_call.1} parent=47 // pred_check
          %p708 = pneg %p246
        $region90: #{tpu_custom_call.1} parent=47 // pred_check_branch
          %710 = sbr.rel (%p708) target = $region92
        $region91: #{tpu_custom_call.1} parent=47 // pred_region
          %s712 = ssub.s32 128, 128
          %713 = vsyncadd %s699, %s712
          %s714 = sadd.s32 %s42, %s40
          %s715 = smul.addr %s714, 128
          %s716 = scalar_lea.hbm %s7, %s715
          %s718 = sshll.u32 %s702, 4
          %s719 = int_to_ptr.vmem [resolvable:$true] %s718
          %721 = dma.vmem_to_hbm [thread:$0]  %s719, 128, %s716, %s699
        $region92: #{tpu_custom_call.1} parent=47 // pred_fallthru
          _
        // Predicated region
        $region93: #{tpu_custom_call.1} parent=47 // pred_check
          %p722 = pneg %p272
        $region94: #{tpu_custom_call.1} parent=47 // pred_check_branch
          %724 = sbr.rel (%p722) target = $region96
        $region95: #{tpu_custom_call.1} parent=47 // pred_region
          %s726 = ssub.s32 128, 128
          %727 = vsyncadd %s704, %s726
          %s728 = smul.addr %s40, 128
          %s729 = scalar_lea.hbm %s8, %s728
          %s731 = sshll.u32 %s707, 4
          %s732 = int_to_ptr.vmem [resolvable:$true] %s731
          %734 = dma.vmem_to_hbm [thread:$0]  %s732, 128, %s729, %s704
        $region96: #{tpu_custom_call.1} parent=47 // pred_fallthru
          _
      $region48: #{tpu_custom_call.1} parent=5 // pred_fallthru
        _
      %p735 = scmp.le.s32.totalorder 2, %s30
      // Predicated region
      $region97: #{tpu_custom_call.1} parent=5 // pred_check
        %p736 = pneg %p735
      $region98: #{tpu_custom_call.1} parent=5 // pred_check_branch
        %738 = sbr.rel (%p736) target = $region100
      $region99: #{tpu_custom_call.1} parent=5 // pred_region
        %s739 = ssub.s32 %s30, 2
        // Predicated region
        $region101: #{tpu_custom_call.1} parent=99 // pred_check
          %p740 = pneg %p252
        $region102: #{tpu_custom_call.1} parent=99 // pred_check_branch
          %742 = sbr.rel (%p740) target = $region104
        $region103: #{tpu_custom_call.1} parent=99 // pred_region
          %s743 = sand.u32 %s237, 1
          %s744 = scalar_lea.sflag [#allocation8], %s743
          %s745 = sand.u32 %s237, 1
          %s746 = smul.addr %s745, 8
          %s747 = scalar_lea.vmem [#allocation17], %s746
          %748 = dma.done %s744, 128
        $region104: #{tpu_custom_call.1} parent=99 // pred_fallthru
          _
        // Predicated region
        $region105: #{tpu_custom_call.1} parent=99 // pred_check
          %p749 = pneg %p278
        $region106: #{tpu_custom_call.1} parent=99 // pred_check_branch
          %751 = sbr.rel (%p749) target = $region108
        $region107: #{tpu_custom_call.1} parent=99 // pred_region
          %s752 = sand.u32 %s263, 1
          %s753 = scalar_lea.sflag [#allocation19], %s752
          %s754 = sand.u32 %s263, 1
          %s755 = smul.addr %s754, 8
          %s756 = scalar_lea.vmem [#allocation18], %s755
          %757 = dma.done %s753, 128
        $region108: #{tpu_custom_call.1} parent=99 // pred_fallthru
          _
      $region100: #{tpu_custom_call.1} parent=5 // pred_fallthru
        _
    $region6: #{tpu_custom_call.1} parent=1 // loop_footer
      %s34 = sadd.s32 1, %s30
    $region7: #{tpu_custom_call.1} parent=1 // loop_footer_branch
      %29 = sbr.rel target = $region3
    $region8: #{tpu_custom_call.1} parent=1 // loop_exit
      _
    %758 = vsyncpa [#allocation7], 1
    %s759 = scalar_lea.sflag [#allocation7], 1
    %760 = vsyncpa %s759, 1
    %761 = vsyncpa [#allocation10], 1
    %s762 = scalar_lea.sflag [#allocation10], 1
    %763 = vsyncpa %s762, 1
    %764 = vsyncpa [#allocation13], 1
    %765 = vsyncpa [#allocation16], 1
    %766 = vsyncpa [#allocation8], 1
    %s767 = scalar_lea.sflag [#allocation8], 1
    %768 = vsyncpa %s767, 1
    %769 = vsyncpa [#allocation19], 1
    %s770 = scalar_lea.sflag [#allocation19], 1
    %771 = vsyncpa %s770, 1

</llo_original>
